<compile_context>
chip_gen: v7x
topology: tpu7x:2x2x1
jax: 0.10.0
libtpu: 0.0.40
codegen_flags: <defaults>
</compile_context>

<pallas_src>
import functools

import jax
import jax.numpy as jnp
from jax import lax
from jax.experimental import pallas as pl
from jax.experimental.pallas import tpu as pltpu

_LANES = 128       # vreg lane width; last dim of the flattened layout
_SUB_M = 64        # rows per register-resident sub-block (64x128 f32 = 8 vregs)
_TILE_M_CAP = 1024  # max rows per grid-step block (bounded VMEM working set)
_T_CHUNK_CAP = 16  # streamed cycles per grid step


def _round_up(x: int, m: int) -> int:
    return ((x + m - 1) // m) * m


def _tensorcores_per_chip() -> int:
    """Best-effort detection of v7x (2 TensorCores/chip) for tile splitting."""
    try:
        kind = jax.devices()[0].device_kind.lower()
    except Exception:
        return 1
    return 2 if ("v7" in kind or "7x" in kind) else 1


def _stability_kernel(src_ref, bits_ref, stab_ref, *scratch,
                      coef, threshold, t_chunk, total_cycles, num_t, sub_m,
                      tail_mask):
    tile_m = src_ref.shape[0]
    n_sub = tile_m // sub_m
    t_f = float(total_cycles)
    inv_t = 1.0 / t_f
    single_chunk = (num_t == 1)
    one_cnt_ref = scratch[0] if scratch else None

    if single_chunk:
        # Whole stream handled in one grid step: cycle constants fold at trace time,
        # no accumulator scratch traffic, stability stored directly.
        base_f = jnp.float32(0.0)
    else:
        t = pl.program_id(1)

        @pl.when(t == 0)
        def _():
            one_cnt_ref[...] = jnp.zeros_like(one_cnt_ref)
            stab_ref[...] = jnp.zeros_like(stab_ref)   # output block doubles as cts accumulator

        base_f = (t * t_chunk).astype(jnp.float32)

    # Cycle numbers and reciprocals for this chunk: computed once per grid step
    # on the scalar unit, hoisted out of the per-sub-block loop.
    cycs = [base_f + jnp.float32(c + 1) for c in range(t_chunk)]
    invs = [jnp.float32(coef) / cycs[c] for c in range(t_chunk)]

    def process(off):
        # One (sub_m, 128) sub-block: state + temporaries stay in vregs across the
        # whole unrolled cycle chunk; VMEM is touched once per operand per chunk.
        src = src_ref[pl.ds(off, sub_m), :]
        if single_chunk:
            one = jnp.zeros((sub_m, _LANES), jnp.float32)
            cts = jnp.zeros((sub_m, _LANES), jnp.float32)
        else:
            one = one_cnt_ref[pl.ds(off, sub_m), :]
            cts = stab_ref[pl.ds(off, sub_m), :]
        for c in range(t_chunk):
            one = one + bits_ref[c, pl.ds(off, sub_m), :].astype(jnp.float32)
            pe = one * invs[c] - src            # bipolar -1 / src folded into src_eff
            hit = jnp.abs(pe) > threshold
            if tail_mask:
                # padded cycles (cycle > T) never update cycle_to_stable
                hit = jnp.logical_and(hit, cycs[c] <= t_f)
            cts = jnp.where(hit, cycs[c], cts)
        if single_chunk:
            stab_ref[pl.ds(off, sub_m), :] = 1.0 - jnp.clip(cts, 1.0, t_f) * inv_t
        else:
            stab_ref[pl.ds(off, sub_m), :] = cts
            one_cnt_ref[pl.ds(off, sub_m), :] = one

    if n_sub == 1:
        process(0)
    else:
        def body(i, carry):
            process(pl.multiple_of(i * sub_m, sub_m))
            return carry

        lax.fori_loop(0, n_sub, body, 0, unroll=False)

    if not single_chunk:
        # Stability.forward on the final cycle chunk.
        @pl.when(pl.program_id(1) == num_t - 1)
        def _():
            stab_ref[...] = 1.0 - jnp.clip(stab_ref[...], 1.0, t_f) * inv_t


def stability_pallas(source, bits, *, scale=1.0, mode="bipolar", threshold=0.05):
    """source: float tensor (any shape); bits: (T,) + source.shape, values in {0,1}."""
    mode = mode.lower()
    assert mode in ("unipolar", "bipolar"), "mode must be 'unipolar' or 'bipolar'"
    bipolar = (mode == "bipolar")
    coef = 2.0 if bipolar else 1.0

    T = int(bits.shape[0])
    assert T >= 1
    assert tuple(bits.shape[1:]) == tuple(source.shape)
    orig_shape = source.shape
    n = int(source.size)

    # ---- element-dim tiling (flattened to a lane-dense (M, 128) layout) ----
    m_raw = pl.cdiv(n, _LANES)
    if m_raw <= _SUB_M:
        tile_m = _round_up(max(m_raw, 8), 8)
        num_m = 1
        sub_m = tile_m                      # single register-resident sub-block
    else:
        m64 = _round_up(m_raw, _SUB_M)
        cap = _TILE_M_CAP
        if _tensorcores_per_chip() >= 2 and m64 >= 2 * _SUB_M:
            # v7x: make num_m >= 2 so the "parallel" axis shards across both TCs.
            cap = min(cap, _round_up(pl.cdiv(m64, 2), _SUB_M))
        tile_m = min(m64, cap)
        num_m = pl.cdiv(m64, tile_m)
        sub_m = _SUB_M
    m_pad = tile_m * num_m
    n_pad = m_pad * _LANES

    # ---- cycle-dim chunking -------------------------------------------------
    t_chunk = T if T < _T_CHUNK_CAP else _T_CHUNK_CAP
    num_t = pl.cdiv(T, t_chunk)
    t_pad = t_chunk * num_t
    tail_mask = (t_pad != T)

    # ---- operand prep ---------------------------------------------------------
    # src_eff folds the bipolar "-1" into the source term:
    #   pe = one_cnt*(coef/cycle) - src_eff
    src = jnp.clip(source.astype(jnp.float32) / scale, -1.0, 1.0)
    if bipolar:
        src = src + 1.0
    src_flat = src.reshape(-1)
    bits_flat = bits.astype(jnp.int8).reshape(T, -1)   # int8 stream -> 4x less HBM traffic
    if n_pad != n:
        src_flat = jnp.pad(src_flat, (0, n_pad - n))
        bits_flat = jnp.pad(bits_flat, ((0, 0), (0, n_pad - n)))
    if t_pad != T:
        # Pad streamed cycles with zero bits; they are masked in-kernel, so cycle
        # numbering and the final /T are unaffected.
        bits_flat = jnp.pad(bits_flat, ((0, t_pad - T), (0, 0)))
    src2 = src_flat.reshape(m_pad, _LANES)
    bits2 = bits_flat.reshape(t_pad, m_pad, _LANES)

    kernel = functools.partial(
        _stability_kernel,
        coef=coef,
        threshold=float(threshold),
        t_chunk=t_chunk,
        total_cycles=T,
        num_t=num_t,
        sub_m=sub_m,
        tail_mask=tail_mask,
    )

    scratch_shapes = []
    if num_t > 1:
        scratch_shapes.append(pltpu.VMEM((tile_m, _LANES), jnp.float32))  # one_cnt carry

    out = pl.pallas_call(
        kernel,
        out_shape=jax.ShapeDtypeStruct((m_pad, _LANES), jnp.float32),
        grid_spec=pltpu.PrefetchScalarGridSpec(
            num_scalar_prefetch=0,
            grid=(num_m, num_t),          # M tiles outer (parallel), T chunks inner (arbitrary)
            in_specs=[
                pl.BlockSpec((tile_m, _LANES), lambda i, t: (i, 0)),             # src_eff (resident per M tile)
                pl.BlockSpec((t_chunk, tile_m, _LANES), lambda i, t: (t, i, 0)),  # int8 bit chunk
            ],
            out_specs=pl.BlockSpec((tile_m, _LANES), lambda i, t: (i, 0)),        # resident; also the cts accumulator
            scratch_shapes=scratch_shapes,
        ),
        compiler_params=pltpu.CompilerParams(
            dimension_semantics=("parallel", "arbitrary"),
            vmem_limit_bytes=32 * 1024 * 1024,
        ),
    )(src2, bits2)

    return out.reshape(-1)[:n].reshape(orig_shape)


def stability_ref(source, bits, *, scale=1.0, mode="bipolar", threshold=0.05):
    """Pure-JAX reference mirroring the PyTorch module.

    Uses the same (mathematically identical) scalar-reciprocal / folded-source
    formulation as the kernel so the comparison is deterministic.
    """
    mode = mode.lower()
    bipolar = (mode == "bipolar")
    coef = 2.0 if bipolar else 1.0
    src = jnp.clip(source.astype(jnp.float32) / scale, -1.0, 1.0)
    src_eff = src + 1.0 if bipolar else src
    T = bits.shape[0]
    one = jnp.zeros_like(src_eff)
    cts = jnp.zeros_like(src_eff)
    for t in range(T):
        cyc = jnp.float32(t + 1)
        inv = jnp.float32(coef) / cyc
        one = one + bits[t].astype(jnp.float32)
        pe = one * inv - src_eff
        cts = jnp.where(jnp.abs(pe) > threshold, cyc, cts)
    t_f = float(T)
    return 1.0 - jnp.clip(cts, 1.0, t_f) * (1.0 / t_f)


if __name__ == "__main__":
    key = jax.random.PRNGKey(0)
    k_src, k_bits, k_src2, k_bits2 = jax.random.split(key, 4)

    # Test 1: friendly shape, T <= 16 (single-chunk fast path).
    N, C, H, W = 2, 4, 16, 16   # numel = 2048
    T = 8
    source = jax.random.uniform(k_src, (N, C, H, W), jnp.float32, -1.0, 1.0)
    bits = (jax.random.uniform(k_bits, (T, N, C, H, W), jnp.float32) < 0.5).astype(jnp.int8)

    out = stability_pallas(source, bits, scale=1.0, mode="bipolar", threshold=0.05)
    out = jax.block_until_ready(out)
    ref = stability_ref(source, bits, scale=1.0, mode="bipolar", threshold=0.05)
    assert out.shape == (N, C, H, W)
    assert jnp.allclose(out, ref, atol=1e-5, rtol=1e-5), "test 1 mismatch vs reference"

    # Test 2: awkward shape (numel not a multiple of 128) and T with a masked tail
    # (exercises host-side padding, multi-chunk accumulation, init/finalize).
    shape2 = (3, 5, 7, 9)       # numel = 945
    T2 = 20                      # t_chunk=16, num_t=2, masked tail of 12 cycles
    source2 = jax.random.uniform(k_src2, shape2, jnp.float32, -1.0, 1.0)
    bits2 = (jax.random.uniform(k_bits2, (T2,) + shape2, jnp.float32) < 0.5).astype(jnp.int8)

    out2 = stability_pallas(source2, bits2, scale=1.0, mode="bipolar", threshold=0.05)
    out2 = jax.block_until_ready(out2)
    ref2 = stability_ref(source2, bits2, scale=1.0, mode="bipolar", threshold=0.05)
    assert out2.shape == shape2
    assert jnp.allclose(out2, ref2, atol=1e-5, rtol=1e-5), "test 2 mismatch vs reference"

    print("KERNEL_OK")
</pallas_src>

<mosaic_0001>
module attributes {stable_mosaic.version = 11 : i64} {
  func.func @_stability_kernel(%arg0: i32, %arg1: i32, %arg2: memref<16x128xf32, #tpu.memory_space<vmem>>, %arg3: memref<8x16x128xi8, #tpu.memory_space<vmem>>, %arg4: memref<16x128xf32, #tpu.memory_space<vmem>>) attributes {dimension_semantics = [#tpu.dimension_semantics<parallel>, #tpu.dimension_semantics<arbitrary>], iteration_bounds = array<i64: 1, 1>, scalar_prefetch = 0 : i64, scratch_operands = 0 : i64, tpu.core_type = #tpu.core_type<tc>, window_params = [{transform_indices = @transform_0, window_bounds = array<i64: 16, 128>}, {transform_indices = @transform_1, window_bounds = array<i64: 8, 16, 128>}, {transform_indices = @transform_2, window_bounds = array<i64: 16, 128>}]} {
    %cst = arith.constant 0.000000e+00 : f32
    %cst_0 = arith.constant 1.000000e+00 : f32
    %0 = arith.addf %cst, %cst_0 : f32
    %cst_1 = arith.constant 0.000000e+00 : f32
    %cst_2 = arith.constant 2.000000e+00 : f32
    %1 = arith.addf %cst_1, %cst_2 : f32
    %cst_3 = arith.constant 0.000000e+00 : f32
    %cst_4 = arith.constant 3.000000e+00 : f32
    %2 = arith.addf %cst_3, %cst_4 : f32
    %cst_5 = arith.constant 0.000000e+00 : f32
    %cst_6 = arith.constant 4.000000e+00 : f32
    %3 = arith.addf %cst_5, %cst_6 : f32
    %cst_7 = arith.constant 0.000000e+00 : f32
    %cst_8 = arith.constant 5.000000e+00 : f32
    %4 = arith.addf %cst_7, %cst_8 : f32
    %cst_9 = arith.constant 0.000000e+00 : f32
    %cst_10 = arith.constant 6.000000e+00 : f32
    %5 = arith.addf %cst_9, %cst_10 : f32
    %cst_11 = arith.constant 0.000000e+00 : f32
    %cst_12 = arith.constant 7.000000e+00 : f32
    %6 = arith.addf %cst_11, %cst_12 : f32
    %cst_13 = arith.constant 0.000000e+00 : f32
    %cst_14 = arith.constant 8.000000e+00 : f32
    %7 = arith.addf %cst_13, %cst_14 : f32
    %cst_15 = arith.constant 2.000000e+00 : f32
    %8 = arith.divf %cst_15, %0 : f32
    %cst_16 = arith.constant 2.000000e+00 : f32
    %9 = arith.divf %cst_16, %1 : f32
    %cst_17 = arith.constant 2.000000e+00 : f32
    %10 = arith.divf %cst_17, %2 : f32
    %cst_18 = arith.constant 2.000000e+00 : f32
    %11 = arith.divf %cst_18, %3 : f32
    %cst_19 = arith.constant 2.000000e+00 : f32
    %12 = arith.divf %cst_19, %4 : f32
    %cst_20 = arith.constant 2.000000e+00 : f32
    %13 = arith.divf %cst_20, %5 : f32
    %cst_21 = arith.constant 2.000000e+00 : f32
    %14 = arith.divf %cst_21, %6 : f32
    %cst_22 = arith.constant 2.000000e+00 : f32
    %15 = arith.divf %cst_22, %7 : f32
    %c0 = arith.constant 0 : index
    %c0_23 = arith.constant 0 : index
    %16 = vector.load %arg2[%c0, %c0_23] : memref<16x128xf32, #tpu.memory_space<vmem>>, vector<16x128xf32>
    %cst_24 = arith.constant 0.000000e+00 : f32
    %17 = vector.broadcast %cst_24 : f32 to vector<16x128xf32>
    %cst_25 = arith.constant 0.000000e+00 : f32
    %18 = vector.broadcast %cst_25 : f32 to vector<16x128xf32>
    %c0_26 = arith.constant 0 : index
    %c0_27 = arith.constant 0 : index
    %c0_28 = arith.constant 0 : index
    %19 = vector.load %arg3[%c0_26, %c0_27, %c0_28] : memref<8x16x128xi8, #tpu.memory_space<vmem>>, vector<1x16x128xi8>
    %20 = vector.shape_cast %19 : vector<1x16x128xi8> to vector<16x128xi8>
    %21 = arith.sitofp %20 : vector<16x128xi8> to vector<16x128xf32>
    %22 = arith.addf %17, %21 : vector<16x128xf32>
    %23 = vector.broadcast %8 : f32 to vector<16x128xf32>
    %24 = arith.mulf %22, %23 : vector<16x128xf32>
    %25 = arith.subf %24, %16 : vector<16x128xf32>
    %26 = math.absf %25 : vector<16x128xf32>
    %cst_29 = arith.constant 5.000000e-02 : f32
    %27 = vector.broadcast %cst_29 : f32 to vector<16x128xf32>
    %28 = arith.cmpf ogt, %26, %27 : vector<16x128xf32>
    %29 = vector.broadcast %0 : f32 to vector<16x128xf32>
    %30 = arith.select %28, %29, %18 : vector<16x128xi1>, vector<16x128xf32>
    %c1 = arith.constant 1 : index
    %c0_30 = arith.constant 0 : index
    %c0_31 = arith.constant 0 : index
    %31 = vector.load %arg3[%c1, %c0_30, %c0_31] : memref<8x16x128xi8, #tpu.memory_space<vmem>>, vector<1x16x128xi8>
    %32 = vector.shape_cast %31 : vector<1x16x128xi8> to vector<16x128xi8>
    %33 = arith.sitofp %32 : vector<16x128xi8> to vector<16x128xf32>
    %34 = arith.addf %22, %33 : vector<16x128xf32>
    %35 = vector.broadcast %9 : f32 to vector<16x128xf32>
    %36 = arith.mulf %34, %35 : vector<16x128xf32>
    %37 = arith.subf %36, %16 : vector<16x128xf32>
    %38 = math.absf %37 : vector<16x128xf32>
    %cst_32 = arith.constant 5.000000e-02 : f32
    %39 = vector.broadcast %cst_32 : f32 to vector<16x128xf32>
    %40 = arith.cmpf ogt, %38, %39 : vector<16x128xf32>
    %41 = vector.broadcast %1 : f32 to vector<16x128xf32>
    %42 = arith.select %40, %41, %30 : vector<16x128xi1>, vector<16x128xf32>
    %c2 = arith.constant 2 : index
    %c0_33 = arith.constant 0 : index
    %c0_34 = arith.constant 0 : index
    %43 = vector.load %arg3[%c2, %c0_33, %c0_34] : memref<8x16x128xi8, #tpu.memory_space<vmem>>, vector<1x16x128xi8>
    %44 = vector.shape_cast %43 : vector<1x16x128xi8> to vector<16x128xi8>
    %45 = arith.sitofp %44 : vector<16x128xi8> to vector<16x128xf32>
    %46 = arith.addf %34, %45 : vector<16x128xf32>
    %47 = vector.broadcast %10 : f32 to vector<16x128xf32>
    %48 = arith.mulf %46, %47 : vector<16x128xf32>
    %49 = arith.subf %48, %16 : vector<16x128xf32>
    %50 = math.absf %49 : vector<16x128xf32>
    %cst_35 = arith.constant 5.000000e-02 : f32
    %51 = vector.broadcast %cst_35 : f32 to vector<16x128xf32>
    %52 = arith.cmpf ogt, %50, %51 : vector<16x128xf32>
    %53 = vector.broadcast %2 : f32 to vector<16x128xf32>
    %54 = arith.select %52, %53, %42 : vector<16x128xi1>, vector<16x128xf32>
    %c3 = arith.constant 3 : index
    %c0_36 = arith.constant 0 : index
    %c0_37 = arith.constant 0 : index
    %55 = vector.load %arg3[%c3, %c0_36, %c0_37] : memref<8x16x128xi8, #tpu.memory_space<vmem>>, vector<1x16x128xi8>
    %56 = vector.shape_cast %55 : vector<1x16x128xi8> to vector<16x128xi8>
    %57 = arith.sitofp %56 : vector<16x128xi8> to vector<16x128xf32>
    %58 = arith.addf %46, %57 : vector<16x128xf32>
    %59 = vector.broadcast %11 : f32 to vector<16x128xf32>
    %60 = arith.mulf %58, %59 : vector<16x128xf32>
    %61 = arith.subf %60, %16 : vector<16x128xf32>
    %62 = math.absf %61 : vector<16x128xf32>
    %cst_38 = arith.constant 5.000000e-02 : f32
    %63 = vector.broadcast %cst_38 : f32 to vector<16x128xf32>
    %64 = arith.cmpf ogt, %62, %63 : vector<16x128xf32>
    %65 = vector.broadcast %3 : f32 to vector<16x128xf32>
    %66 = arith.select %64, %65, %54 : vector<16x128xi1>, vector<16x128xf32>
    %c4 = arith.constant 4 : index
    %c0_39 = arith.constant 0 : index
    %c0_40 = arith.constant 0 : index
    %67 = vector.load %arg3[%c4, %c0_39, %c0_40] : memref<8x16x128xi8, #tpu.memory_space<vmem>>, vector<1x16x128xi8>
    %68 = vector.shape_cast %67 : vector<1x16x128xi8> to vector<16x128xi8>
    %69 = arith.sitofp %68 : vector<16x128xi8> to vector<16x128xf32>
    %70 = arith.addf %58, %69 : vector<16x128xf32>
    %71 = vector.broadcast %12 : f32 to vector<16x128xf32>
    %72 = arith.mulf %70, %71 : vector<16x128xf32>
    %73 = arith.subf %72, %16 : vector<16x128xf32>
    %74 = math.absf %73 : vector<16x128xf32>
    %cst_41 = arith.constant 5.000000e-02 : f32
    %75 = vector.broadcast %cst_41 : f32 to vector<16x128xf32>
    %76 = arith.cmpf ogt, %74, %75 : vector<16x128xf32>
    %77 = vector.broadcast %4 : f32 to vector<16x128xf32>
    %78 = arith.select %76, %77, %66 : vector<16x128xi1>, vector<16x128xf32>
    %c5 = arith.constant 5 : index
    %c0_42 = arith.constant 0 : index
    %c0_43 = arith.constant 0 : index
    %79 = vector.load %arg3[%c5, %c0_42, %c0_43] : memref<8x16x128xi8, #tpu.memory_space<vmem>>, vector<1x16x128xi8>
    %80 = vector.shape_cast %79 : vector<1x16x128xi8> to vector<16x128xi8>
    %81 = arith.sitofp %80 : vector<16x128xi8> to vector<16x128xf32>
    %82 = arith.addf %70, %81 : vector<16x128xf32>
    %83 = vector.broadcast %13 : f32 to vector<16x128xf32>
    %84 = arith.mulf %82, %83 : vector<16x128xf32>
    %85 = arith.subf %84, %16 : vector<16x128xf32>
    %86 = math.absf %85 : vector<16x128xf32>
    %cst_44 = arith.constant 5.000000e-02 : f32
    %87 = vector.broadcast %cst_44 : f32 to vector<16x128xf32>
    %88 = arith.cmpf ogt, %86, %87 : vector<16x128xf32>
    %89 = vector.broadcast %5 : f32 to vector<16x128xf32>
    %90 = arith.select %88, %89, %78 : vector<16x128xi1>, vector<16x128xf32>
    %c6 = arith.constant 6 : index
    %c0_45 = arith.constant 0 : index
    %c0_46 = arith.constant 0 : index
    %91 = vector.load %arg3[%c6, %c0_45, %c0_46] : memref<8x16x128xi8, #tpu.memory_space<vmem>>, vector<1x16x128xi8>
    %92 = vector.shape_cast %91 : vector<1x16x128xi8> to vector<16x128xi8>
    %93 = arith.sitofp %92 : vector<16x128xi8> to vector<16x128xf32>
    %94 = arith.addf %82, %93 : vector<16x128xf32>
    %95 = vector.broadcast %14 : f32 to vector<16x128xf32>
    %96 = arith.mulf %94, %95 : vector<16x128xf32>
    %97 = arith.subf %96, %16 : vector<16x128xf32>
    %98 = math.absf %97 : vector<16x128xf32>
    %cst_47 = arith.constant 5.000000e-02 : f32
    %99 = vector.broadcast %cst_47 : f32 to vector<16x128xf32>
    %100 = arith.cmpf ogt, %98, %99 : vector<16x128xf32>
    %101 = vector.broadcast %6 : f32 to vector<16x128xf32>
    %102 = arith.select %100, %101, %90 : vector<16x128xi1>, vector<16x128xf32>
    %c7 = arith.constant 7 : index
    %c0_48 = arith.constant 0 : index
    %c0_49 = arith.constant 0 : index
    %103 = vector.load %arg3[%c7, %c0_48, %c0_49] : memref<8x16x128xi8, #tpu.memory_space<vmem>>, vector<1x16x128xi8>
    %104 = vector.shape_cast %103 : vector<1x16x128xi8> to vector<16x128xi8>
    %105 = arith.sitofp %104 : vector<16x128xi8> to vector<16x128xf32>
    %106 = arith.addf %94, %105 : vector<16x128xf32>
    %107 = vector.broadcast %15 : f32 to vector<16x128xf32>
    %108 = arith.mulf %106, %107 : vector<16x128xf32>
    %109 = arith.subf %108, %16 : vector<16x128xf32>
    %110 = math.absf %109 : vector<16x128xf32>
    %cst_50 = arith.constant 5.000000e-02 : f32
    %111 = vector.broadcast %cst_50 : f32 to vector<16x128xf32>
    %112 = arith.cmpf ogt, %110, %111 : vector<16x128xf32>
    %113 = vector.broadcast %7 : f32 to vector<16x128xf32>
    %114 = arith.select %112, %113, %102 : vector<16x128xi1>, vector<16x128xf32>
    %cst_51 = arith.constant 1.000000e+00 : f32
    %cst_52 = arith.constant 8.000000e+00 : f32
    %115 = vector.broadcast %cst_51 : f32 to vector<16x128xf32>
    %116 = arith.maximumf %115, %114 : vector<16x128xf32>
    %117 = vector.broadcast %cst_52 : f32 to vector<16x128xf32>
    %118 = arith.minimumf %117, %116 : vector<16x128xf32>
    %cst_53 = arith.constant 1.250000e-01 : f32
    %119 = vector.broadcast %cst_53 : f32 to vector<16x128xf32>
    %120 = arith.mulf %118, %119 : vector<16x128xf32>
    %cst_54 = arith.constant 1.000000e+00 : f32
    %121 = vector.broadcast %cst_54 : f32 to vector<16x128xf32>
    %122 = arith.subf %121, %120 : vector<16x128xf32>
    %c0_55 = arith.constant 0 : index
    %c0_56 = arith.constant 0 : index
    %123 = vector.load %arg4[%c0_55, %c0_56] : memref<16x128xf32, #tpu.memory_space<vmem>>, vector<16x128xf32>
    tpu.vector_store %arg4[%c0_55, %c0_56], %122 {strides = array<i32>} : memref<16x128xf32, #tpu.memory_space<vmem>>, vector<16x128xf32>,
    return
  }
  func.func @transform_0(%arg0: i32, %arg1: i32) -> (i32, i32) {
    %c0_i32 = arith.constant 0 : i32
    %c0_i32_0 = arith.constant 0 : i32
    return %arg0, %c0_i32 : i32, i32
  }
  func.func @transform_1(%arg0: i32, %arg1: i32) -> (i32, i32, i32) {
    %c0_i32 = arith.constant 0 : i32
    %c0_i32_0 = arith.constant 0 : i32
    return %arg1, %arg0, %c0_i32 : i32, i32, i32
  }
  func.func @transform_2(%arg0: i32, %arg1: i32) -> (i32, i32) {
    %c0_i32 = arith.constant 0 : i32
    %c0_i32_0 = arith.constant 0 : i32
    return %arg0, %c0_i32 : i32, i32
  }
}

</mosaic_0001>

<llo_original>
// kernel: tpu_custom_call.1
$region0: #{tpu_custom_call.1}
  #allocation0 [shape = 'u32[]', space=smem, size = 0x4, offset = 0x4, fixed_abs, tag = 'smem constant byte address 0x4 - core index']
  #allocation1 [shape = 'u32[144,128]{1,0:T(1,128)}', space=vmem, size = 0x12000, scoped, tag = 'internal scratch']
  %s0 = inlined_call_operand.hbm [shape: f32[16,128], index: 0, kind: input, shape index: {}]
  %s1 = inlined_call_operand.hbm [shape: s8[8,16,128], index: 1, kind: input, shape index: {}]
  %s2 = inlined_call_operand.hbm [shape: f32[16,128], index: 2, kind: output, shape index: {}]
  %s3 = sld [smem:[#allocation0]]
  $region26: #{tpu_custom_call.1} parent=0
    _
  %s5 = ssub.s32 1, %s3
  %s6 = scalar_select 0, %s5, %s3
  $region1: #{tpu_custom_call.1} parent=0
    #allocation2 [shape = 'u8[8192]{0}', space=vmem, size = 0x2000, scoped, tag = 'input window, operand 0, single buffered']
    #allocation3 [shape = 's32[1]{0}', space=sflag, size = 0x4, scoped, tag = 'scoped memory for tpu_custom_call.1']
    #allocation4 [shape = 's32[1]{0}', space=sflag, size = 0x4, scoped, tag = 'scoped memory for tpu_custom_call.1']
    #allocation5 [shape = 'u8[16384]{0}', space=vmem, size = 0x4000, scoped, tag = 'input window, operand 1, single buffered']
    #allocation6 [shape = 's32[1]{0}', space=sflag, size = 0x4, scoped, tag = 'scoped memory for tpu_custom_call.1']
    #allocation7 [shape = 'u8[8192]{0}', space=vmem, size = 0x2000, scoped, tag = 'output window, operand 0, single buffered']
    %7 = vsyncpa [#allocation3], 0
    %8 = vsyncpa [#allocation6], 0
    %9 = vsyncpa [#allocation4], 0
    // Predicated region
    $region2: #{tpu_custom_call.1} parent=1 // pred_check
      _
    $region3: #{tpu_custom_call.1} parent=1 // pred_check_branch
      %11 = sbr.rel (0) target = $region5
    $region4: #{tpu_custom_call.1} parent=1 // pred_region
      %s13 = ssub.s32 256, 256
      %14 = vsyncadd [#allocation3], %s13
      %s15 = sshll.u32 [#allocation2], 4
      %s16 = int_to_ptr.vmem [resolvable:$true] %s15
      %21 = dma.hbm_to_vmem [thread:$0]  %s0, 256, %s16, [#allocation3], 128, 128, 8
    $region5: #{tpu_custom_call.1} parent=1 // pred_fallthru
      _
    // Predicated region
    $region6: #{tpu_custom_call.1} parent=1 // pred_check
      _
    $region7: #{tpu_custom_call.1} parent=1 // pred_check_branch
      %23 = sbr.rel (0) target = $region9
    $region8: #{tpu_custom_call.1} parent=1 // pred_region
      %s25 = ssub.s32 512, 512
      %26 = vsyncadd [#allocation6], %s25
      %s27 = sshll.u32 [#allocation5], 4
      %s28 = int_to_ptr.vmem [resolvable:$true] %s27
      %33 = dma.hbm_to_vmem [thread:$0]  %s1, 512, %s28, [#allocation6], 32, 32, 2
    $region9: #{tpu_custom_call.1} parent=1 // pred_fallthru
      _
    // Predicated region
    $region10: #{tpu_custom_call.1} parent=1 // pred_check
      _
    $region11: #{tpu_custom_call.1} parent=1 // pred_check_branch
      %35 = sbr.rel (0) target = $region13
    $region12: #{tpu_custom_call.1} parent=1 // pred_region
      %36 = dma.done [#allocation3], 256
    $region13: #{tpu_custom_call.1} parent=1 // pred_fallthru
      _
    // Predicated region
    $region14: #{tpu_custom_call.1} parent=1 // pred_check
      _
    $region15: #{tpu_custom_call.1} parent=1 // pred_check_branch
      %38 = sbr.rel (0) target = $region17
    $region16: #{tpu_custom_call.1} parent=1 // pred_region
      %39 = dma.done [#allocation6], 512
    $region17: #{tpu_custom_call.1} parent=1 // pred_fallthru
      _
    %v40 = vld [vmem:[#allocation2] sm:$0xff]
    %v41 = vld [vmem:[#allocation2 + $0x8] sm:$0xff]
    %v42 = vld [vmem:[#allocation5] sm:$0x3]
    %v43 = vld [vmem:[#allocation5 + $0x2] sm:$0x3]
    %v44 = vunpack.c.0.s8 %v42
    %v45 = vunpack.c.0.s8 %v43
    %v46 = vcvt.s32.f32 %v44
    %v47 = vcvt.s32.f32 %v45
    %v48 = vadd.f32 %v46, 0.0
    %v49 = vadd.f32 %v47, 0.0
    %v50 = vmul.f32 %v48, 2.0
    %v51 = vmul.f32 %v49, 2.0
    %v52 = vsub.f32 %v50, %v40
    %v53 = vsub.f32 %v51, %v41
    %v54 = vand.u32 2147483647, %v52
    %v55 = vand.u32 2147483647, %v53
    %vm56 = vcmp.gt.f32.partialorder %v54, 0.05
    %vm57 = vcmp.gt.f32.partialorder %v55, 0.05
    %v58 = vsel %vm56, 1.0, 0.0
    %v59 = vsel %vm57, 1.0, 0.0
    %s60 = scalar_lea.vmem [#allocation5], 4
    %v61 = vld [vmem:[%s60] sm:$0x3]
    %v62 = vld [vmem:[%s60 + $0x2] sm:$0x3]
    %v63 = vunpack.c.0.s8 %v61
    %v64 = vunpack.c.0.s8 %v62
    %v65 = vcvt.s32.f32 %v63
    %v66 = vcvt.s32.f32 %v64
    %v67 = vadd.f32 %v48, %v65
    %v68 = vadd.f32 %v49, %v66
    %v69 = vsub.f32 %v67, %v40
    %v70 = vsub.f32 %v68, %v41
    %v71 = vand.u32 2147483647, %v69
    %v72 = vand.u32 2147483647, %v70
    %vm73 = vcmp.gt.f32.partialorder %v71, 0.05
    %vm74 = vcmp.gt.f32.partialorder %v72, 0.05
    %v75 = vsel %vm73, 2.0, %v58
    %v76 = vsel %vm74, 2.0, %v59
    %s77 = scalar_lea.vmem [#allocation5], 8
    %v78 = vld [vmem:[%s77] sm:$0x3]
    %v79 = vld [vmem:[%s77 + $0x2] sm:$0x3]
    %v80 = vunpack.c.0.s8 %v78
    %v81 = vunpack.c.0.s8 %v79
    %v82 = vcvt.s32.f32 %v80
    %v83 = vcvt.s32.f32 %v81
    %v84 = vadd.f32 %v67, %v82
    %v85 = vadd.f32 %v68, %v83
    %v86 = vmul.f32 %v84, 0.6666667
    %v87 = vmul.f32 %v85, 0.6666667
    %v88 = vsub.f32 %v86, %v40
    %v89 = vsub.f32 %v87, %v41
    %v90 = vand.u32 2147483647, %v88
    %v91 = vand.u32 2147483647, %v89
    %vm92 = vcmp.gt.f32.partialorder %v90, 0.05
    %vm93 = vcmp.gt.f32.partialorder %v91, 0.05
    %v94 = vsel %vm92, 3.0, %v75
    %v95 = vsel %vm93, 3.0, %v76
    %s96 = scalar_lea.vmem [#allocation5], 12
    %v97 = vld [vmem:[%s96] sm:$0x3]
    %v98 = vld [vmem:[%s96 + $0x2] sm:$0x3]
    %v99 = vunpack.c.0.s8 %v97
    %v100 = vunpack.c.0.s8 %v98
    %v101 = vcvt.s32.f32 %v99
    %v102 = vcvt.s32.f32 %v100
    %v103 = vadd.f32 %v84, %v101
    %v104 = vadd.f32 %v85, %v102
    %v105 = vmul.f32 %v103, 0.5
    %v106 = vmul.f32 %v104, 0.5
    %v107 = vsub.f32 %v105, %v40
    %v108 = vsub.f32 %v106, %v41
    %v109 = vand.u32 2147483647, %v107
    %v110 = vand.u32 2147483647, %v108
    %vm111 = vcmp.gt.f32.partialorder %v109, 0.05
    %vm112 = vcmp.gt.f32.partialorder %v110, 0.05
    %v113 = vsel %vm111, 4.0, %v94
    %v114 = vsel %vm112, 4.0, %v95
    %s115 = scalar_lea.vmem [#allocation5], 16
    %v116 = vld [vmem:[%s115] sm:$0x3]
    %v117 = vld [vmem:[%s115 + $0x2] sm:$0x3]
    %v118 = vunpack.c.0.s8 %v116
    %v119 = vunpack.c.0.s8 %v117
    %v120 = vcvt.s32.f32 %v118
    %v121 = vcvt.s32.f32 %v119
    %v122 = vadd.f32 %v103, %v120
    %v123 = vadd.f32 %v104, %v121
    %v124 = vmul.f32 %v122, 0.4
    %v125 = vmul.f32 %v123, 0.4
    %v126 = vsub.f32 %v124, %v40
    %v127 = vsub.f32 %v125, %v41
    %v128 = vand.u32 2147483647, %v126
    %v129 = vand.u32 2147483647, %v127
    %vm130 = vcmp.gt.f32.partialorder %v128, 0.05
    %vm131 = vcmp.gt.f32.partialorder %v129, 0.05
    %v132 = vsel %vm130, 5.0, %v113
    %v133 = vsel %vm131, 5.0, %v114
    %s134 = scalar_lea.vmem [#allocation5], 20
    %v135 = vld [vmem:[%s134] sm:$0x3]
    %v136 = vld [vmem:[%s134 + $0x2] sm:$0x3]
    %v137 = vunpack.c.0.s8 %v135
    %v138 = vunpack.c.0.s8 %v136
    %v139 = vcvt.s32.f32 %v137
    %v140 = vcvt.s32.f32 %v138
    %v141 = vadd.f32 %v122, %v139
    %v142 = vadd.f32 %v123, %v140
    %v143 = vmul.f32 %v141, 0.33333334
    %v144 = vmul.f32 %v142, 0.33333334
    %v145 = vsub.f32 %v143, %v40
    %v146 = vsub.f32 %v144, %v41
    %v147 = vand.u32 2147483647, %v145
    %v148 = vand.u32 2147483647, %v146
    %vm149 = vcmp.gt.f32.partialorder %v147, 0.05
    %vm150 = vcmp.gt.f32.partialorder %v148, 0.05
    %v151 = vsel %vm149, 6.0, %v132
    %v152 = vsel %vm150, 6.0, %v133
    %s153 = scalar_lea.vmem [#allocation5], 24
    %v154 = vld [vmem:[%s153] sm:$0x3]
    %v155 = vld [vmem:[%s153 + $0x2] sm:$0x3]
    %v156 = vunpack.c.0.s8 %v154
    %v157 = vunpack.c.0.s8 %v155
    %v158 = vcvt.s32.f32 %v156
    %v159 = vcvt.s32.f32 %v157
    %v160 = vadd.f32 %v141, %v158
    %v161 = vadd.f32 %v142, %v159
    %v162 = vmul.f32 %v160, 0.2857143
    %v163 = vmul.f32 %v161, 0.2857143
    %v164 = vsub.f32 %v162, %v40
    %v165 = vsub.f32 %v163, %v41
    %v166 = vand.u32 2147483647, %v164
    %v167 = vand.u32 2147483647, %v165
    %vm168 = vcmp.gt.f32.partialorder %v166, 0.05
    %vm169 = vcmp.gt.f32.partialorder %v167, 0.05
    %v170 = vsel %vm168, 7.0, %v151
    %v171 = vsel %vm169, 7.0, %v152
    %s172 = scalar_lea.vmem [#allocation5], 28
    %v173 = vld [vmem:[%s172] sm:$0x3]
    %v174 = vld [vmem:[%s172 + $0x2] sm:$0x3]
    %v175 = vunpack.c.0.s8 %v173
    %v176 = vunpack.c.0.s8 %v174
    %v177 = vcvt.s32.f32 %v175
    %v178 = vcvt.s32.f32 %v176
    %v179 = vadd.f32 %v160, %v177
    %v180 = vadd.f32 %v161, %v178
    %v181 = vmul.f32 %v179, 0.25
    %v182 = vmul.f32 %v180, 0.25
    %v183 = vsub.f32 %v181, %v40
    %v184 = vsub.f32 %v182, %v41
    %v185 = vand.u32 2147483647, %v183
    %v186 = vand.u32 2147483647, %v184
    %vm187 = vcmp.gt.f32.partialorder %v185, 0.05
    %vm188 = vcmp.gt.f32.partialorder %v186, 0.05
    %v189 = vsel %vm187, 8.0, %v170
    %v190 = vsel %vm188, 8.0, %v171
    %v191 = vmax.f32 %v189, 1.0
    %v192 = vmax.f32 %v190, 1.0
    %v193 = vmin.f32 %v191, 8.0
    %v194 = vmin.f32 %v192, 8.0
    %v195 = vmul.f32 %v193, 0.125
    %v196 = vmul.f32 %v194, 0.125
    %v197 = vsub.f32 1.0, %v195
    %v198 = vsub.f32 1.0, %v196
    %199 = vst [vmem:[#allocation7] sm:$0xff] %v197
    %200 = vst [vmem:[#allocation7 + $0x8] sm:$0xff] %v198
    // Predicated region
    $region18: #{tpu_custom_call.1} parent=1 // pred_check
      _
    $region19: #{tpu_custom_call.1} parent=1 // pred_check_branch
      %202 = sbr.rel (0) target = $region21
    $region20: #{tpu_custom_call.1} parent=1 // pred_region
      %s204 = ssub.s32 256, 256
      %205 = vsyncadd [#allocation4], %s204
      %s206 = sshll.u32 [#allocation7], 4
      %s207 = int_to_ptr.vmem [resolvable:$true] %s206
      %212 = dma.vmem_to_hbm [thread:$0]  %s207, 256, %s2, [#allocation4], 128, 128, 8
    $region21: #{tpu_custom_call.1} parent=1 // pred_fallthru
      _
    // Predicated region
    $region22: #{tpu_custom_call.1} parent=1 // pred_check
      _
    $region23: #{tpu_custom_call.1} parent=1 // pred_check_branch
      %214 = sbr.rel (0) target = $region25
    $region24: #{tpu_custom_call.1} parent=1 // pred_region
      %215 = dma.done [#allocation4], 256
    $region25: #{tpu_custom_call.1} parent=1 // pred_fallthru
      _
    %216 = vsyncpa [#allocation3], 1
    %217 = vsyncpa [#allocation6], 1
    %218 = vsyncpa [#allocation4], 1

</llo_original>
